<compile_context>
chip_gen: v7x
topology: tpu7x:2x2x1
jax: 0.10.0
libtpu: 0.0.40
codegen_flags: <defaults>
</compile_context>

<pallas_src>
import functools
import math

import jax
import jax.numpy as jnp
from jax import lax
from jax.experimental import pallas as pl
from jax.experimental.pallas import tpu as pltpu


def _layernorm(x, gamma, beta, eps):
    mean = jnp.mean(x, axis=-1, keepdims=True)
    var = jnp.mean((x - mean) ** 2, axis=-1, keepdims=True)
    return (x - mean) * lax.rsqrt(var + eps) * gamma + beta


def _gelu_erf(x):
    # recbole FlexFeedForward gelu: x * 0.5 * (1 + erf(x / sqrt(2)))
    return 0.5 * x * (1.0 + lax.erf(x * (1.0 / math.sqrt(2.0))))


def _gelu_tanh(x):
    # Optional EUP-friendly approximation (use only if a bundle dump shows the
    # VALU saturating); ~1e-3 deviation from the exact-erf PyTorch reference.
    c = math.sqrt(2.0 / math.pi)
    return 0.5 * x * (1.0 + jnp.tanh(c * (x + 0.044715 * x * x * x)))


def _get_act(name, approx_gelu=False):
    acts = {
        "gelu": _gelu_tanh if approx_gelu else _gelu_erf,
        "relu": lambda x: jnp.maximum(x, 0.0),
        "swish": lambda x: x * jax.nn.sigmoid(x),
        "tanh": jnp.tanh,
        "sigmoid": jax.nn.sigmoid,
    }
    return acts[name]


def _mixer_kernel(act_fn, ln_eps, mm_dtype,
                  x_ref,
                  g1_ref, be1_ref, tw1_ref, tb1_ref, tw2_ref, tb2_ref,
                  g2_ref, be2_ref, cw1_ref, cb1_ref, cw2_ref, cb2_ref,
                  out_ref):
    x = x_ref[...].astype(jnp.float32)                      # (bt, Sp, H)
    bt, s, h = x.shape

    # ---------------- pre1: token (item) mixer ----------------
    xn = _layernorm(x, g1_ref[...], be1_ref[...], ln_eps)   # (bt, Sp, H) f32

    # Single large MXU matmul: contract over Sp with M = bt*H.  The minor-dim
    # transpose runs on the XLU; the reshape is layout-free when H % 8 == 0
    # (typical recbole hidden sizes 32/64/128).
    xn_t = jnp.transpose(xn, (0, 2, 1)).reshape(bt * h, s)          # (bt*H, Sp)
    t1 = jnp.dot(xn_t.astype(mm_dtype), tw1_ref[...],
                 preferred_element_type=jnp.float32)                # (bt*H, E)
    t1 = act_fn(t1 + tb1_ref[...]).astype(mm_dtype)                 # fused downcast
    # dropout: identity at inference
    t2 = jnp.dot(t1, tw2_ref[...],
                 preferred_element_type=jnp.float32) + tb2_ref[...]  # (bt*H, Sp)
    t2 = jnp.transpose(t2.reshape(bt, h, s), (0, 2, 1))             # (bt, Sp, H)
    item = t2 + x                                                   # residual

    # ---------------- pre2: channel mixer ----------------
    item2d = item.reshape(bt * s, h)               # layout-free (Sp % 8 == 0)
    hn = _layernorm(item2d, g2_ref[...], be2_ref[...], ln_eps)
    c1 = jnp.dot(hn.astype(mm_dtype), cw1_ref[...],
                 preferred_element_type=jnp.float32) + cb1_ref[...]  # (bt*Sp, I)
    c1 = act_fn(c1).astype(mm_dtype)                                 # fused downcast
    # dropout: identity at inference
    c2 = jnp.dot(c1, cw2_ref[...],
                 preferred_element_type=jnp.float32) + cb2_ref[...]  # (bt*Sp, H)
    out = c2 + item2d                                                # residual

    # TODO(synk): for H < 128 a lane-dense (bt, Sp*H) out_spec would avoid
    # masked vst stores, but the in-kernel (bt*Sp,H)->(bt,Sp*H) reshape forces
    # a relayout; left as-is pending a bundle-dump check.
    out_ref[...] = out.reshape(bt, s, h).astype(out_ref.dtype)


def _vmem_budget_bytes():
    try:
        cap = int(pltpu.get_tpu_info().vmem_capacity_bytes)
    except Exception:
        cap = 64 * 2 ** 20          # conservative (v7x-sized) fallback
    return int(cap * 3 // 4)        # leave ~25% headroom for compiler scratch


def _pick_block_batch(B, Sp, H, E, I, weight_bytes, x_itemsize, vmem_budget):
    # Target ~512-1024 rows for the flattened channel-mixer matmul (M = bt*Sp).
    bt = min(B, max(1, -(-768 // Sp)))
    if B >= 2:
        bt = min(bt, max(1, B // 2))   # >=2 grid steps -> v7x megacore sharding

    def est(btv):
        io = 4 * btv * Sp * H * x_itemsize                  # dbl-buffered in+out
        tmp = 4 * btv * (8 * Sp * H + H * E + Sp * I)       # fp32 temporaries
        return weight_bytes + io + tmp

    while bt > 1 and est(bt) > vmem_budget:
        bt -= 1
    while B % bt != 0:
        bt -= 1
    return bt


def mlp_mixer_layer(x, params, *, hidden_act="gelu", ln_eps=1e-12,
                    block_batch=None, matmul_dtype=jnp.bfloat16,
                    approx_gelu=False):
    """x: (B, S, H); params in PyTorch layouts (see init_params).

    Note: matmul_dtype=bf16 gives ~1e-2 relative deviation from the fp32
    PyTorch reference; pass matmul_dtype=jnp.float32 for validation runs.
    """
    (g1, be1, tw1, tb1, tw2, tb2, g2, be2, cw1, cb1, cw2, cb2) = params
    B, S, H = x.shape
    E = tw1.shape[0]              # seq_len * expansion_factor
    I = cw1.shape[0]              # hidden_size * expansion_factor

    # --- one-time parameter prep (transpose / pad / cast, outside the kernel) ---
    Sp = ((S + 7) // 8) * 8
    pad = Sp - S
    f32 = jnp.float32

    g1p, be1p = g1.reshape(1, H).astype(f32), be1.reshape(1, H).astype(f32)
    g2p, be2p = g2.reshape(1, H).astype(f32), be2.reshape(1, H).astype(f32)

    # Conv1d(k=1) weights -> matmul layouts (Sp,E) / (E,Sp); zero pad on the
    # padded sequence positions keeps results exact.
    w_tok1 = tw1[:, :, 0].T                      # (S, E)
    w_tok2 = tw2[:, :, 0].T                      # (E, S)
    b_tok1 = tb1.reshape(1, E).astype(f32)       # lane-major bias
    b_tok2 = tb2.reshape(1, S).astype(f32)
    if pad:
        w_tok1 = jnp.pad(w_tok1, ((0, pad), (0, 0)))
        w_tok2 = jnp.pad(w_tok2, ((0, 0), (0, pad)))
        b_tok2 = jnp.pad(b_tok2, ((0, 0), (0, pad)))
    w_tok1 = w_tok1.astype(matmul_dtype)         # bf16 once, HBM resident
    w_tok2 = w_tok2.astype(matmul_dtype)

    w_ch1 = cw1.T.astype(matmul_dtype)           # (H, I)  == torch weight.T
    w_ch2 = cw2.T.astype(matmul_dtype)           # (I, H)
    b_ch1 = cb1.reshape(1, I).astype(f32)
    b_ch2 = cb2.reshape(1, H).astype(f32)

    xp = jnp.pad(x, ((0, 0), (0, pad), (0, 0))) if pad else x

    kernel_params = [g1p, be1p, w_tok1, b_tok1, w_tok2, b_tok2,
                     g2p, be2p, w_ch1, b_ch1, w_ch2, b_ch2]
    weight_bytes = sum(int(p.size) * p.dtype.itemsize for p in kernel_params)

    vmem_budget = _vmem_budget_bytes()
    if block_batch is None:
        bt = _pick_block_batch(B, Sp, H, E, I, weight_bytes,
                               xp.dtype.itemsize, vmem_budget)
    else:
        bt = block_batch
        assert B % bt == 0, "block_batch must divide batch size"

    kernel = functools.partial(_mixer_kernel,
                               _get_act(hidden_act, approx_gelu),
                               ln_eps, matmul_dtype)

    in_specs = [pl.BlockSpec((bt, Sp, H), lambda i: (i, 0, 0))]
    for p in kernel_params:
        # Grid-invariant weights: whole array, fixed block 0, single-buffered
        # (default double-buffering would only duplicate their VMEM footprint).
        in_specs.append(pl.BlockSpec(p.shape, lambda i, nd=p.ndim: (0,) * nd,
                                     pipeline_mode=pl.Buffered(1)))

    out = pl.pallas_call(
        kernel,
        out_shape=jax.ShapeDtypeStruct((B, Sp, H), x.dtype),
        grid_spec=pltpu.PrefetchScalarGridSpec(
            num_scalar_prefetch=0,
            grid=(B // bt,),
            in_specs=in_specs,
            out_specs=pl.BlockSpec((bt, Sp, H), lambda i: (i, 0, 0)),
        ),
        compiler_params=pltpu.CompilerParams(
            dimension_semantics=("parallel",),   # batch blocks are independent
            vmem_limit_bytes=int(vmem_budget),
        ),
    )(xp, *kernel_params)

    return out[:, :S, :] if pad else out


def init_params(key, hidden_size, seq_len, intermediate_size):
    """Deterministic synthetic parameters in PyTorch layouts (normal(0, 0.02))."""
    std = 0.02
    ef = intermediate_size // hidden_size     # expansion_factor
    e_seq = seq_len * ef                      # token-mixer expanded channels
    e_chan = hidden_size * ef                 # channel-mixer expanded features

    def w(k, shape):
        return std * jax.random.normal(k, shape, jnp.float32)

    ks = jax.random.split(key, 8)
    # pre1: LayerNorm(H); Conv1d(S, S*ef, 1); Conv1d(S*ef, S, 1)
    g1 = jnp.ones((hidden_size,), jnp.float32)
    be1 = jnp.zeros((hidden_size,), jnp.float32)
    tw1 = w(ks[0], (e_seq, seq_len, 1))       # Conv1d weight (out_ch, in_ch, k)
    tb1 = w(ks[1], (e_seq,))
    tw2 = w(ks[2], (seq_len, e_seq, 1))
    tb2 = w(ks[3], (seq_len,))
    # pre2: LayerNorm(H); Linear(H, H*ef); Linear(H*ef, H)
    g2 = jnp.ones((hidden_size,), jnp.float32)
    be2 = jnp.zeros((hidden_size,), jnp.float32)
    cw1 = w(ks[4], (e_chan, hidden_size))     # torch Linear weight (out, in)
    cb1 = w(ks[5], (e_chan,))
    cw2 = w(ks[6], (hidden_size, e_chan))
    cb2 = w(ks[7], (hidden_size,))
    return [g1, be1, tw1, tb1, tw2, tb2, g2, be2, cw1, cb1, cw2, cb2]


if __name__ == "__main__":
    B, S, HS, INTER = 2, 8, 32, 64
    key = jax.random.PRNGKey(0)
    kx, kp = jax.random.split(key)

    x = jax.random.normal(kx, (B, S, HS), jnp.float32)
    params = init_params(kp, HS, S, INTER)

    out = mlp_mixer_layer(x, params, hidden_act="gelu", ln_eps=1e-12)
    jax.block_until_ready(out)
    assert out.shape == (B, S, HS) and out.dtype == jnp.float32
    print("KERNEL_OK")
</pallas_src>

<mosaic_0001>
module attributes {stable_mosaic.version = 11 : i64} {
  func.func @_mixer_kernel(%arg0: i32, %arg1: memref<1x8x32xf32, #tpu.memory_space<vmem>>, %arg2: memref<1x32xf32, #tpu.memory_space<vmem>>, %arg3: memref<1x32xf32, #tpu.memory_space<vmem>>, %arg4: memref<8x16xbf16, #tpu.memory_space<vmem>>, %arg5: memref<1x16xf32, #tpu.memory_space<vmem>>, %arg6: memref<16x8xbf16, #tpu.memory_space<vmem>>, %arg7: memref<1x8xf32, #tpu.memory_space<vmem>>, %arg8: memref<1x32xf32, #tpu.memory_space<vmem>>, %arg9: memref<1x32xf32, #tpu.memory_space<vmem>>, %arg10: memref<32x64xbf16, #tpu.memory_space<vmem>>, %arg11: memref<1x64xf32, #tpu.memory_space<vmem>>, %arg12: memref<64x32xbf16, #tpu.memory_space<vmem>>, %arg13: memref<1x32xf32, #tpu.memory_space<vmem>>, %arg14: memref<1x8x32xf32, #tpu.memory_space<vmem>>) attributes {dimension_semantics = [#tpu.dimension_semantics<parallel>], iteration_bounds = array<i64: 2>, scalar_prefetch = 0 : i64, scratch_operands = 0 : i64, tpu.core_type = #tpu.core_type<tc>, window_params = [{transform_indices = @transform_0, window_bounds = array<i64: 1, 8, 32>}, {pipeline_mode = #tpu.pipeline_mode<synchronous>, transform_indices = @transform_1, window_bounds = array<i64: 1, 32>}, {pipeline_mode = #tpu.pipeline_mode<synchronous>, transform_indices = @transform_2, window_bounds = array<i64: 1, 32>}, {pipeline_mode = #tpu.pipeline_mode<synchronous>, transform_indices = @transform_3, window_bounds = array<i64: 8, 16>}, {pipeline_mode = #tpu.pipeline_mode<synchronous>, transform_indices = @transform_4, window_bounds = array<i64: 1, 16>}, {pipeline_mode = #tpu.pipeline_mode<synchronous>, transform_indices = @transform_5, window_bounds = array<i64: 16, 8>}, {pipeline_mode = #tpu.pipeline_mode<synchronous>, transform_indices = @transform_6, window_bounds = array<i64: 1, 8>}, {pipeline_mode = #tpu.pipeline_mode<synchronous>, transform_indices = @transform_7, window_bounds = array<i64: 1, 32>}, {pipeline_mode = #tpu.pipeline_mode<synchronous>, transform_indices = @transform_8, window_bounds = array<i64: 1, 32>}, {pipeline_mode = #tpu.pipeline_mode<synchronous>, transform_indices = @transform_9, window_bounds = array<i64: 32, 64>}, {pipeline_mode = #tpu.pipeline_mode<synchronous>, transform_indices = @transform_10, window_bounds = array<i64: 1, 64>}, {pipeline_mode = #tpu.pipeline_mode<synchronous>, transform_indices = @transform_11, window_bounds = array<i64: 64, 32>}, {pipeline_mode = #tpu.pipeline_mode<synchronous>, transform_indices = @transform_12, window_bounds = array<i64: 1, 32>}, {transform_indices = @transform_13, window_bounds = array<i64: 1, 8, 32>}]} {
    %c0 = arith.constant 0 : index
    %c0_0 = arith.constant 0 : index
    %c0_1 = arith.constant 0 : index
    %0 = vector.load %arg1[%c0, %c0_0, %c0_1] : memref<1x8x32xf32, #tpu.memory_space<vmem>>, vector<1x8x32xf32>
    %c0_2 = arith.constant 0 : index
    %c0_3 = arith.constant 0 : index
    %1 = vector.load %arg2[%c0_2, %c0_3] : memref<1x32xf32, #tpu.memory_space<vmem>>, vector<1x32xf32>
    %c0_4 = arith.constant 0 : index
    %c0_5 = arith.constant 0 : index
    %2 = vector.load %arg3[%c0_4, %c0_5] : memref<1x32xf32, #tpu.memory_space<vmem>>, vector<1x32xf32>
    %cst = arith.constant dense<0.000000e+00> : vector<1x8xf32>
    %3 = vector.multi_reduction <add>, %0, %cst [2] : vector<1x8x32xf32> to vector<1x8xf32>
    %4 = vector.shape_cast %3 : vector<1x8xf32> to vector<1x8x1xf32>
    %cst_6 = arith.constant 3.200000e+01 : f32
    %5 = vector.broadcast %cst_6 : f32 to vector<1x8x1xf32>
    %6 = arith.divf %4, %5 : vector<1x8x1xf32>
    %7 = vector.broadcast %6 : vector<1x8x1xf32> to vector<1x8x32xf32>
    %8 = arith.subf %0, %7 : vector<1x8x32xf32>
    %9 = arith.mulf %8, %8 : vector<1x8x32xf32>
    %cst_7 = arith.constant dense<0.000000e+00> : vector<1x8xf32>
    %10 = vector.multi_reduction <add>, %9, %cst_7 [2] : vector<1x8x32xf32> to vector<1x8xf32>
    %11 = vector.shape_cast %10 : vector<1x8xf32> to vector<1x8x1xf32>
    %cst_8 = arith.constant 3.200000e+01 : f32
    %12 = vector.broadcast %cst_8 : f32 to vector<1x8x1xf32>
    %13 = arith.divf %11, %12 : vector<1x8x1xf32>
    %14 = vector.broadcast %6 : vector<1x8x1xf32> to vector<1x8x32xf32>
    %15 = arith.subf %0, %14 : vector<1x8x32xf32>
    %cst_9 = arith.constant 9.99999996E-13 : f32
    %16 = vector.broadcast %cst_9 : f32 to vector<1x8x1xf32>
    %17 = arith.addf %13, %16 : vector<1x8x1xf32>
    %18 = math.rsqrt %17 : vector<1x8x1xf32>
    %19 = vector.broadcast %18 : vector<1x8x1xf32> to vector<1x8x32xf32>
    %20 = arith.mulf %15, %19 : vector<1x8x32xf32>
    %21 = vector.shape_cast %1 : vector<1x32xf32> to vector<1x1x32xf32>
    %22 = vector.broadcast %21 : vector<1x1x32xf32> to vector<1x8x32xf32>
    %23 = arith.mulf %20, %22 : vector<1x8x32xf32>
    %24 = vector.shape_cast %2 : vector<1x32xf32> to vector<1x1x32xf32>
    %25 = vector.broadcast %24 : vector<1x1x32xf32> to vector<1x8x32xf32>
    %26 = arith.addf %23, %25 : vector<1x8x32xf32>
    %27 = tpu.transpose %26, [0, 2, 1] : vector<1x8x32xf32> -> vector<1x32x8xf32>
    %28 = vector.shape_cast %27 : vector<1x32x8xf32> to vector<32x8xf32>
    %29 = arith.truncf %28 : vector<32x8xf32> to vector<32x8xbf16>
    %c0_10 = arith.constant 0 : index
    %c0_11 = arith.constant 0 : index
    %30 = vector.load %arg4[%c0_10, %c0_11] : memref<8x16xbf16, #tpu.memory_space<vmem>>, vector<8x16xbf16>
    %cst_12 = arith.constant dense<0.000000e+00> : vector<32x16xf32>
    %31 = tpu.matmul %29, %30, %cst_12 {dimension_numbers = #tpu.dot_dimension_numbers<[1], [0], [0], [1], [0, 0, 1, 1], [], []>} : vector<32x8xbf16>, vector<8x16xbf16>, vector<32x16xf32> -> vector<32x16xf32>
    %c0_13 = arith.constant 0 : index
    %c0_14 = arith.constant 0 : index
    %32 = vector.load %arg5[%c0_13, %c0_14] : memref<1x16xf32, #tpu.memory_space<vmem>>, vector<1x16xf32>
    %33 = vector.broadcast %32 : vector<1x16xf32> to vector<32x16xf32>
    %34 = arith.addf %31, %33 : vector<32x16xf32>
    %cst_15 = arith.constant 5.000000e-01 : f32
    %35 = vector.broadcast %cst_15 : f32 to vector<32x16xf32>
    %36 = arith.mulf %35, %34 : vector<32x16xf32>
    %cst_16 = arith.constant 0.707106769 : f32
    %37 = vector.broadcast %cst_16 : f32 to vector<32x16xf32>
    %38 = arith.mulf %34, %37 : vector<32x16xf32>
    %39 = math.erf %38 : vector<32x16xf32>
    %cst_17 = arith.constant 1.000000e+00 : f32
    %40 = vector.broadcast %cst_17 : f32 to vector<32x16xf32>
    %41 = arith.addf %40, %39 : vector<32x16xf32>
    %42 = arith.mulf %36, %41 : vector<32x16xf32>
    %43 = arith.truncf %42 : vector<32x16xf32> to vector<32x16xbf16>
    %c0_18 = arith.constant 0 : index
    %c0_19 = arith.constant 0 : index
    %44 = vector.load %arg6[%c0_18, %c0_19] : memref<16x8xbf16, #tpu.memory_space<vmem>>, vector<16x8xbf16>
    %cst_20 = arith.constant dense<0.000000e+00> : vector<32x8xf32>
    %45 = tpu.matmul %43, %44, %cst_20 {dimension_numbers = #tpu.dot_dimension_numbers<[1], [0], [0], [1], [0, 0, 1, 1], [], []>} : vector<32x16xbf16>, vector<16x8xbf16>, vector<32x8xf32> -> vector<32x8xf32>
    %c0_21 = arith.constant 0 : index
    %c0_22 = arith.constant 0 : index
    %46 = vector.load %arg7[%c0_21, %c0_22] : memref<1x8xf32, #tpu.memory_space<vmem>>, vector<1x8xf32>
    %47 = vector.broadcast %46 : vector<1x8xf32> to vector<32x8xf32>
    %48 = arith.addf %45, %47 : vector<32x8xf32>
    %49 = vector.shape_cast %48 : vector<32x8xf32> to vector<1x32x8xf32>
    %50 = tpu.transpose %49, [0, 2, 1] : vector<1x32x8xf32> -> vector<1x8x32xf32>
    %51 = arith.addf %50, %0 : vector<1x8x32xf32>
    %52 = vector.shape_cast %51 : vector<1x8x32xf32> to vector<8x32xf32>
    %c0_23 = arith.constant 0 : index
    %c0_24 = arith.constant 0 : index
    %53 = vector.load %arg8[%c0_23, %c0_24] : memref<1x32xf32, #tpu.memory_space<vmem>>, vector<1x32xf32>
    %c0_25 = arith.constant 0 : index
    %c0_26 = arith.constant 0 : index
    %54 = vector.load %arg9[%c0_25, %c0_26] : memref<1x32xf32, #tpu.memory_space<vmem>>, vector<1x32xf32>
    %cst_27 = arith.constant dense<0.000000e+00> : vector<8xf32>
    %55 = vector.multi_reduction <add>, %52, %cst_27 [1] : vector<8x32xf32> to vector<8xf32>
    %56 = vector.shape_cast %55 : vector<8xf32> to vector<8x1xf32>
    %cst_28 = arith.constant 3.200000e+01 : f32
    %57 = vector.broadcast %cst_28 : f32 to vector<8x1xf32>
    %58 = arith.divf %56, %57 : vector<8x1xf32>
    %59 = vector.broadcast %58 : vector<8x1xf32> to vector<8x32xf32>
    %60 = arith.subf %52, %59 : vector<8x32xf32>
    %61 = arith.mulf %60, %60 : vector<8x32xf32>
    %cst_29 = arith.constant dense<0.000000e+00> : vector<8xf32>
    %62 = vector.multi_reduction <add>, %61, %cst_29 [1] : vector<8x32xf32> to vector<8xf32>
    %63 = vector.shape_cast %62 : vector<8xf32> to vector<8x1xf32>
    %cst_30 = arith.constant 3.200000e+01 : f32
    %64 = vector.broadcast %cst_30 : f32 to vector<8x1xf32>
    %65 = arith.divf %63, %64 : vector<8x1xf32>
    %66 = vector.broadcast %58 : vector<8x1xf32> to vector<8x32xf32>
    %67 = arith.subf %52, %66 : vector<8x32xf32>
    %cst_31 = arith.constant 9.99999996E-13 : f32
    %68 = vector.broadcast %cst_31 : f32 to vector<8x1xf32>
    %69 = arith.addf %65, %68 : vector<8x1xf32>
    %70 = math.rsqrt %69 : vector<8x1xf32>
    %71 = vector.broadcast %70 : vector<8x1xf32> to vector<8x32xf32>
    %72 = arith.mulf %67, %71 : vector<8x32xf32>
    %73 = vector.broadcast %53 : vector<1x32xf32> to vector<8x32xf32>
    %74 = arith.mulf %72, %73 : vector<8x32xf32>
    %75 = vector.broadcast %54 : vector<1x32xf32> to vector<8x32xf32>
    %76 = arith.addf %74, %75 : vector<8x32xf32>
    %77 = arith.truncf %76 : vector<8x32xf32> to vector<8x32xbf16>
    %c0_32 = arith.constant 0 : index
    %c0_33 = arith.constant 0 : index
    %78 = vector.load %arg10[%c0_32, %c0_33] : memref<32x64xbf16, #tpu.memory_space<vmem>>, vector<32x64xbf16>
    %cst_34 = arith.constant dense<0.000000e+00> : vector<8x64xf32>
    %79 = tpu.matmul %77, %78, %cst_34 {dimension_numbers = #tpu.dot_dimension_numbers<[1], [0], [0], [1], [0, 0, 1, 1], [], []>} : vector<8x32xbf16>, vector<32x64xbf16>, vector<8x64xf32> -> vector<8x64xf32>
    %c0_35 = arith.constant 0 : index
    %c0_36 = arith.constant 0 : index
    %80 = vector.load %arg11[%c0_35, %c0_36] : memref<1x64xf32, #tpu.memory_space<vmem>>, vector<1x64xf32>
    %81 = vector.broadcast %80 : vector<1x64xf32> to vector<8x64xf32>
    %82 = arith.addf %79, %81 : vector<8x64xf32>
    %cst_37 = arith.constant 5.000000e-01 : f32
    %83 = vector.broadcast %cst_37 : f32 to vector<8x64xf32>
    %84 = arith.mulf %83, %82 : vector<8x64xf32>
    %cst_38 = arith.constant 0.707106769 : f32
    %85 = vector.broadcast %cst_38 : f32 to vector<8x64xf32>
    %86 = arith.mulf %82, %85 : vector<8x64xf32>
    %87 = math.erf %86 : vector<8x64xf32>
    %cst_39 = arith.constant 1.000000e+00 : f32
    %88 = vector.broadcast %cst_39 : f32 to vector<8x64xf32>
    %89 = arith.addf %88, %87 : vector<8x64xf32>
    %90 = arith.mulf %84, %89 : vector<8x64xf32>
    %91 = arith.truncf %90 : vector<8x64xf32> to vector<8x64xbf16>
    %c0_40 = arith.constant 0 : index
    %c0_41 = arith.constant 0 : index
    %92 = vector.load %arg12[%c0_40, %c0_41] : memref<64x32xbf16, #tpu.memory_space<vmem>>, vector<64x32xbf16>
    %cst_42 = arith.constant dense<0.000000e+00> : vector<8x32xf32>
    %93 = tpu.matmul %91, %92, %cst_42 {dimension_numbers = #tpu.dot_dimension_numbers<[1], [0], [0], [1], [0, 0, 1, 1], [], []>} : vector<8x64xbf16>, vector<64x32xbf16>, vector<8x32xf32> -> vector<8x32xf32>
    %c0_43 = arith.constant 0 : index
    %c0_44 = arith.constant 0 : index
    %94 = vector.load %arg13[%c0_43, %c0_44] : memref<1x32xf32, #tpu.memory_space<vmem>>, vector<1x32xf32>
    %95 = vector.broadcast %94 : vector<1x32xf32> to vector<8x32xf32>
    %96 = arith.addf %93, %95 : vector<8x32xf32>
    %97 = arith.addf %96, %52 : vector<8x32xf32>
    %98 = vector.shape_cast %97 : vector<8x32xf32> to vector<1x8x32xf32>
    %c0_45 = arith.constant 0 : index
    %c0_46 = arith.constant 0 : index
    %c0_47 = arith.constant 0 : index
    %99 = vector.load %arg14[%c0_45, %c0_46, %c0_47] : memref<1x8x32xf32, #tpu.memory_space<vmem>>, vector<1x8x32xf32>
    tpu.vector_store %arg14[%c0_45, %c0_46, %c0_47], %98 {strides = array<i32>} : memref<1x8x32xf32, #tpu.memory_space<vmem>>, vector<1x8x32xf32>,
    return
  }
  func.func @transform_0(%arg0: i32) -> (i32, i32, i32) {
    %c0_i32 = arith.constant 0 : i32
    %c0_i32_0 = arith.constant 0 : i32
    %c0_i32_1 = arith.constant 0 : i32
    return %arg0, %c0_i32, %c0_i32_0 : i32, i32, i32
  }
  func.func @transform_1(%arg0: i32) -> (i32, i32) {
    %c0_i32 = arith.constant 0 : i32
    %c0_i32_0 = arith.constant 0 : i32
    %c0_i32_1 = arith.constant 0 : i32
    return %c0_i32, %c0_i32_0 : i32, i32
  }
  func.func @transform_2(%arg0: i32) -> (i32, i32) {
    %c0_i32 = arith.constant 0 : i32
    %c0_i32_0 = arith.constant 0 : i32
    %c0_i32_1 = arith.constant 0 : i32
    return %c0_i32, %c0_i32_0 : i32, i32
  }
  func.func @transform_3(%arg0: i32) -> (i32, i32) {
    %c0_i32 = arith.constant 0 : i32
    %c0_i32_0 = arith.constant 0 : i32
    %c0_i32_1 = arith.constant 0 : i32
    return %c0_i32, %c0_i32_0 : i32, i32
  }
  func.func @transform_4(%arg0: i32) -> (i32, i32) {
    %c0_i32 = arith.constant 0 : i32
    %c0_i32_0 = arith.constant 0 : i32
    %c0_i32_1 = arith.constant 0 : i32
    return %c0_i32, %c0_i32_0 : i32, i32
  }
  func.func @transform_5(%arg0: i32) -> (i32, i32) {
    %c0_i32 = arith.constant 0 : i32
    %c0_i32_0 = arith.constant 0 : i32
    %c0_i32_1 = arith.constant 0 : i32
    return %c0_i32, %c0_i32_0 : i32, i32
  }
  func.func @transform_6(%arg0: i32) -> (i32, i32) {
    %c0_i32 = arith.constant 0 : i32
    %c0_i32_0 = arith.constant 0 : i32
    %c0_i32_1 = arith.constant 0 : i32
    return %c0_i32, %c0_i32_0 : i32, i32
  }
  func.func @transform_7(%arg0: i32) -> (i32, i32) {
    %c0_i32 = arith.constant 0 : i32
    %c0_i32_0 = arith.constant 0 : i32
    %c0_i32_1 = arith.constant 0 : i32
    return %c0_i32, %c0_i32_0 : i32, i32
  }
  func.func @transform_8(%arg0: i32) -> (i32, i32) {
    %c0_i32 = arith.constant 0 : i32
    %c0_i32_0 = arith.constant 0 : i32
    %c0_i32_1 = arith.constant 0 : i32
    return %c0_i32, %c0_i32_0 : i32, i32
  }
  func.func @transform_9(%arg0: i32) -> (i32, i32) {
    %c0_i32 = arith.constant 0 : i32
    %c0_i32_0 = arith.constant 0 : i32
    %c0_i32_1 = arith.constant 0 : i32
    return %c0_i32, %c0_i32_0 : i32, i32
  }
  func.func @transform_10(%arg0: i32) -> (i32, i32) {
    %c0_i32 = arith.constant 0 : i32
    %c0_i32_0 = arith.constant 0 : i32
    %c0_i32_1 = arith.constant 0 : i32
    return %c0_i32, %c0_i32_0 : i32, i32
  }
  func.func @transform_11(%arg0: i32) -> (i32, i32) {
    %c0_i32 = arith.constant 0 : i32
    %c0_i32_0 = arith.constant 0 : i32
    %c0_i32_1 = arith.constant 0 : i32
    return %c0_i32, %c0_i32_0 : i32, i32
  }
  func.func @transform_12(%arg0: i32) -> (i32, i32) {
    %c0_i32 = arith.constant 0 : i32
    %c0_i32_0 = arith.constant 0 : i32
    %c0_i32_1 = arith.constant 0 : i32
    return %c0_i32, %c0_i32_0 : i32, i32
  }
  func.func @transform_13(%arg0: i32) -> (i32, i32, i32) {
    %c0_i32 = arith.constant 0 : i32
    %c0_i32_0 = arith.constant 0 : i32
    %c0_i32_1 = arith.constant 0 : i32
    return %arg0, %c0_i32, %c0_i32_0 : i32, i32, i32
  }
}

</mosaic_0001>

<llo_original>
// kernel: tpu_custom_call.1
$region0: #{tpu_custom_call.1}
  #allocation0 [shape = 'u32[]', space=smem, size = 0x4, offset = 0x4, fixed_abs, tag = 'smem constant byte address 0x4 - core index']
  #allocation1 [shape = 'u32[144,128]{1,0:T(1,128)}', space=vmem, size = 0x12000, scoped, tag = 'internal scratch']
  %s0 = inlined_call_operand.vmem [shape: f32[2,8,32], index: 0, kind: input, shape index: {}]
  %s1 = inlined_call_operand.vmem [shape: f32[1,32], index: 1, kind: input, shape index: {}]
  %s2 = inlined_call_operand.vmem [shape: f32[1,32], index: 2, kind: input, shape index: {}]
  %s3 = inlined_call_operand.vmem [shape: bf16[8,16], index: 3, kind: input, shape index: {}]
  %s4 = inlined_call_operand.vmem [shape: f32[1,16], index: 4, kind: input, shape index: {}]
  %s5 = inlined_call_operand.vmem [shape: bf16[16,8], index: 5, kind: input, shape index: {}]
  %s6 = inlined_call_operand.vmem [shape: f32[1,8], index: 6, kind: input, shape index: {}]
  %s7 = inlined_call_operand.vmem [shape: f32[1,32], index: 7, kind: input, shape index: {}]
  %s8 = inlined_call_operand.vmem [shape: f32[1,32], index: 8, kind: input, shape index: {}]
  %s9 = inlined_call_operand.vmem [shape: bf16[32,64], index: 9, kind: input, shape index: {}]
  %s10 = inlined_call_operand.vmem [shape: f32[1,64], index: 10, kind: input, shape index: {}]
  %s11 = inlined_call_operand.vmem [shape: bf16[64,32], index: 11, kind: input, shape index: {}]
  %s12 = inlined_call_operand.vmem [shape: f32[1,32], index: 12, kind: input, shape index: {}]
  %s13 = inlined_call_operand.hbm [shape: f32[2,8,32], index: 13, kind: output, shape index: {}]
  %s14 = sld [smem:[#allocation0]]
  $region85: #{tpu_custom_call.1} parent=0
    _
  %s16 = ssub.s32 1, %s14
  %s17 = scalar_select 0, %s16, %s14
  $region1: #{tpu_custom_call.1} parent=0
    #allocation2 [shape = 'u8[8192]{0}', space=vmem, size = 0x2000, scoped, tag = 'output window, operand 0']
    #allocation3 [shape = 's32[2]{0}', space=sflag, size = 0x8, scoped, tag = 'scoped memory for tpu_custom_call.1']
    %18 = vsyncpa [#allocation3], 0
    %s19 = scalar_lea.sflag [#allocation3], 1
    %20 = vsyncpa %s19, 0
    loop: start=0, step=1, limit=4
    $region2: #{tpu_custom_call.1} parent=1 // loop_pre_header
      _
    $region3: #{tpu_custom_call.1} parent=1 // loop_header
      %s22 = sphi 0, %s26
      %p23 = scmp.ge.s32.totalorder %s22, 4
      %s32 = sphi 0, %s34
      %s35 = sphi 0, %s32
      %s36 = sphi 0, %s35
      %s52 = sphi 0, %s36
      %s56 = sphi 0, %s56
      %s58 = sphi 0, %s56
      %s59 = sphi 0, %s58
      %s73 = sphi 0, %s59
      %s77 = sphi 0, %s77
      %s79 = sphi 0, %s77
      %s80 = sphi 0, %s79
      %s94 = sphi 0, %s80
      %s98 = sphi 0, %s98
      %s100 = sphi 0, %s98
      %s101 = sphi 0, %s100
      %s115 = sphi 0, %s101
      %s119 = sphi 0, %s119
      %s121 = sphi 0, %s119
      %s122 = sphi 0, %s121
      %s136 = sphi 0, %s122
      %s140 = sphi 0, %s140
      %s142 = sphi 0, %s140
      %s143 = sphi 0, %s142
      %s157 = sphi 0, %s143
      %s161 = sphi 0, %s161
      %s163 = sphi 0, %s161
      %s164 = sphi 0, %s163
      %s178 = sphi 0, %s164
      %s182 = sphi 0, %s182
      %s184 = sphi 0, %s182
      %s185 = sphi 0, %s184
      %s199 = sphi 0, %s185
      %s203 = sphi 0, %s203
      %s205 = sphi 0, %s203
      %s206 = sphi 0, %s205
      %s220 = sphi 0, %s206
      %s224 = sphi 0, %s224
      %s226 = sphi 0, %s224
      %s227 = sphi 0, %s226
      %s241 = sphi 0, %s227
      %s245 = sphi 0, %s245
      %s247 = sphi 0, %s245
      %s248 = sphi 0, %s247
      %s262 = sphi 0, %s248
      %s266 = sphi 0, %s266
      %s268 = sphi 0, %s266
      %s269 = sphi 0, %s268
      %s283 = sphi 0, %s269
      %s287 = sphi 0, %s287
      %s289 = sphi 0, %s287
      %s290 = sphi 0, %s289
      %s304 = sphi 0, %s290
      %s310 = sphi 0, %s312
      %s313 = sphi 0, %s310
      %s314 = sphi 0, %s313
      %s330 = sphi 0, %s314
    $region4: #{tpu_custom_call.1} parent=1 // loop_header_branch
      %25 = sbr.rel (%p23) target = $region8
    $region5: #{tpu_custom_call.1} parent=1 // loop_body
      %s27 = ssub.s32 %s22, 1
      %s28 = ssub.s32 %s22, 2
      %s29 = sadd.s32 %s22, 1
      %s30 = ssub.s32 %s22, %s29
      %p31 = scmp.eq.s32.totalorder %s30, 0
      %s33 = sadd.s32 %s32, 1
      %s34 = scalar_select %p31, %s32, %s33
      %p37 = pneg %p31
      %p38 = scmp.eq.s32.totalorder %s22, 1
      %p39 = por %p37, %p38
      %p40 = scmp.ne.s32.totalorder %s32, %s35
      %p41 = scmp.eq.s32.totalorder %s22, 0
      %p42 = por %p40, %p41
      %p43 = scmp.ne.s32.totalorder %s32, %s35
      %p44 = scmp.eq.s32.totalorder %s27, 1
      %p45 = por %p43, %p44
      %p46 = scmp.ne.s32.totalorder %s35, %s36
      %p47 = scmp.eq.s32.totalorder %s27, 0
      %p48 = por %p46, %p47
      %p49 = scmp.ne.s32.totalorder %s35, %s36
      %p50 = scmp.eq.s32.totalorder %s28, 1
      %p51 = por %p49, %p50
      %p53 = scmp.ne.s32.totalorder %s36, %s52
      %p54 = scmp.eq.s32.totalorder %s28, 0
      %p55 = por %p53, %p54
      %s57 = sadd.s32 %s56, 1
      %p60 = scmp.eq.s32.totalorder %s22, 1
      %p61 = scmp.ne.s32.totalorder %s56, %s58
      %p62 = scmp.eq.s32.totalorder %s22, 0
      %p63 = por %p61, %p62
      %p64 = scmp.ne.s32.totalorder %s56, %s58
      %p65 = scmp.eq.s32.totalorder %s27, 1
      %p66 = por %p64, %p65
      %p67 = scmp.ne.s32.totalorder %s58, %s59
      %p68 = scmp.eq.s32.totalorder %s27, 0
      %p69 = por %p67, %p68
      %p70 = scmp.ne.s32.totalorder %s58, %s59
      %p71 = scmp.eq.s32.totalorder %s28, 1
      %p72 = por %p70, %p71
      %p74 = scmp.ne.s32.totalorder %s59, %s73
      %p75 = scmp.eq.s32.totalorder %s28, 0
      %p76 = por %p74, %p75
      %s78 = sadd.s32 %s77, 1
      %p81 = scmp.eq.s32.totalorder %s22, 1
      %p82 = scmp.ne.s32.totalorder %s77, %s79
      %p83 = scmp.eq.s32.totalorder %s22, 0
      %p84 = por %p82, %p83
      %p85 = scmp.ne.s32.totalorder %s77, %s79
      %p86 = scmp.eq.s32.totalorder %s27, 1
      %p87 = por %p85, %p86
      %p88 = scmp.ne.s32.totalorder %s79, %s80
      %p89 = scmp.eq.s32.totalorder %s27, 0
      %p90 = por %p88, %p89
      %p91 = scmp.ne.s32.totalorder %s79, %s80
      %p92 = scmp.eq.s32.totalorder %s28, 1
      %p93 = por %p91, %p92
      %p95 = scmp.ne.s32.totalorder %s80, %s94
      %p96 = scmp.eq.s32.totalorder %s28, 0
      %p97 = por %p95, %p96
      %s99 = sadd.s32 %s98, 1
      %p102 = scmp.eq.s32.totalorder %s22, 1
      %p103 = scmp.ne.s32.totalorder %s98, %s100
      %p104 = scmp.eq.s32.totalorder %s22, 0
      %p105 = por %p103, %p104
      %p106 = scmp.ne.s32.totalorder %s98, %s100
      %p107 = scmp.eq.s32.totalorder %s27, 1
      %p108 = por %p106, %p107
      %p109 = scmp.ne.s32.totalorder %s100, %s101
      %p110 = scmp.eq.s32.totalorder %s27, 0
      %p111 = por %p109, %p110
      %p112 = scmp.ne.s32.totalorder %s100, %s101
      %p113 = scmp.eq.s32.totalorder %s28, 1
      %p114 = por %p112, %p113
      %p116 = scmp.ne.s32.totalorder %s101, %s115
      %p117 = scmp.eq.s32.totalorder %s28, 0
      %p118 = por %p116, %p117
      %s120 = sadd.s32 %s119, 1
      %p123 = scmp.eq.s32.totalorder %s22, 1
      %p124 = scmp.ne.s32.totalorder %s119, %s121
      %p125 = scmp.eq.s32.totalorder %s22, 0
      %p126 = por %p124, %p125
      %p127 = scmp.ne.s32.totalorder %s119, %s121
      %p128 = scmp.eq.s32.totalorder %s27, 1
      %p129 = por %p127, %p128
      %p130 = scmp.ne.s32.totalorder %s121, %s122
      %p131 = scmp.eq.s32.totalorder %s27, 0
      %p132 = por %p130, %p131
      %p133 = scmp.ne.s32.totalorder %s121, %s122
      %p134 = scmp.eq.s32.totalorder %s28, 1
      %p135 = por %p133, %p134
      %p137 = scmp.ne.s32.totalorder %s122, %s136
      %p138 = scmp.eq.s32.totalorder %s28, 0
      %p139 = por %p137, %p138
      %s141 = sadd.s32 %s140, 1
      %p144 = scmp.eq.s32.totalorder %s22, 1
      %p145 = scmp.ne.s32.totalorder %s140, %s142
      %p146 = scmp.eq.s32.totalorder %s22, 0
      %p147 = por %p145, %p146
      %p148 = scmp.ne.s32.totalorder %s140, %s142
      %p149 = scmp.eq.s32.totalorder %s27, 1
      %p150 = por %p148, %p149
      %p151 = scmp.ne.s32.totalorder %s142, %s143
      %p152 = scmp.eq.s32.totalorder %s27, 0
      %p153 = por %p151, %p152
      %p154 = scmp.ne.s32.totalorder %s142, %s143
      %p155 = scmp.eq.s32.totalorder %s28, 1
      %p156 = por %p154, %p155
      %p158 = scmp.ne.s32.totalorder %s143, %s157
      %p159 = scmp.eq.s32.totalorder %s28, 0
      %p160 = por %p158, %p159
      %s162 = sadd.s32 %s161, 1
      %p165 = scmp.eq.s32.totalorder %s22, 1
      %p166 = scmp.ne.s32.totalorder %s161, %s163
      %p167 = scmp.eq.s32.totalorder %s22, 0
      %p168 = por %p166, %p167
      %p169 = scmp.ne.s32.totalorder %s161, %s163
      %p170 = scmp.eq.s32.totalorder %s27, 1
      %p171 = por %p169, %p170
      %p172 = scmp.ne.s32.totalorder %s163, %s164
      %p173 = scmp.eq.s32.totalorder %s27, 0
      %p174 = por %p172, %p173
      %p175 = scmp.ne.s32.totalorder %s163, %s164
      %p176 = scmp.eq.s32.totalorder %s28, 1
      %p177 = por %p175, %p176
      %p179 = scmp.ne.s32.totalorder %s164, %s178
      %p180 = scmp.eq.s32.totalorder %s28, 0
      %p181 = por %p179, %p180
      %s183 = sadd.s32 %s182, 1
      %p186 = scmp.eq.s32.totalorder %s22, 1
      %p187 = scmp.ne.s32.totalorder %s182, %s184
      %p188 = scmp.eq.s32.totalorder %s22, 0
      %p189 = por %p187, %p188
      %p190 = scmp.ne.s32.totalorder %s182, %s184
      %p191 = scmp.eq.s32.totalorder %s27, 1
      %p192 = por %p190, %p191
      %p193 = scmp.ne.s32.totalorder %s184, %s185
      %p194 = scmp.eq.s32.totalorder %s27, 0
      %p195 = por %p193, %p194
      %p196 = scmp.ne.s32.totalorder %s184, %s185
      %p197 = scmp.eq.s32.totalorder %s28, 1
      %p198 = por %p196, %p197
      %p200 = scmp.ne.s32.totalorder %s185, %s199
      %p201 = scmp.eq.s32.totalorder %s28, 0
      %p202 = por %p200, %p201
      %s204 = sadd.s32 %s203, 1
      %p207 = scmp.eq.s32.totalorder %s22, 1
      %p208 = scmp.ne.s32.totalorder %s203, %s205
      %p209 = scmp.eq.s32.totalorder %s22, 0
      %p210 = por %p208, %p209
      %p211 = scmp.ne.s32.totalorder %s203, %s205
      %p212 = scmp.eq.s32.totalorder %s27, 1
      %p213 = por %p211, %p212
      %p214 = scmp.ne.s32.totalorder %s205, %s206
      %p215 = scmp.eq.s32.totalorder %s27, 0
      %p216 = por %p214, %p215
      %p217 = scmp.ne.s32.totalorder %s205, %s206
      %p218 = scmp.eq.s32.totalorder %s28, 1
      %p219 = por %p217, %p218
      %p221 = scmp.ne.s32.totalorder %s206, %s220
      %p222 = scmp.eq.s32.totalorder %s28, 0
      %p223 = por %p221, %p222
      %s225 = sadd.s32 %s224, 1
      %p228 = scmp.eq.s32.totalorder %s22, 1
      %p229 = scmp.ne.s32.totalorder %s224, %s226
      %p230 = scmp.eq.s32.totalorder %s22, 0
      %p231 = por %p229, %p230
      %p232 = scmp.ne.s32.totalorder %s224, %s226
      %p233 = scmp.eq.s32.totalorder %s27, 1
      %p234 = por %p232, %p233
      %p235 = scmp.ne.s32.totalorder %s226, %s227
      %p236 = scmp.eq.s32.totalorder %s27, 0
      %p237 = por %p235, %p236
      %p238 = scmp.ne.s32.totalorder %s226, %s227
      %p239 = scmp.eq.s32.totalorder %s28, 1
      %p240 = por %p238, %p239
      %p242 = scmp.ne.s32.totalorder %s227, %s241
      %p243 = scmp.eq.s32.totalorder %s28, 0
      %p244 = por %p242, %p243
      %s246 = sadd.s32 %s245, 1
      %p249 = scmp.eq.s32.totalorder %s22, 1
      %p250 = scmp.ne.s32.totalorder %s245, %s247
      %p251 = scmp.eq.s32.totalorder %s22, 0
      %p252 = por %p250, %p251
      %p253 = scmp.ne.s32.totalorder %s245, %s247
      %p254 = scmp.eq.s32.totalorder %s27, 1
      %p255 = por %p253, %p254
      %p256 = scmp.ne.s32.totalorder %s247, %s248
      %p257 = scmp.eq.s32.totalorder %s27, 0
      %p258 = por %p256, %p257
      %p259 = scmp.ne.s32.totalorder %s247, %s248
      %p260 = scmp.eq.s32.totalorder %s28, 1
      %p261 = por %p259, %p260
      %p263 = scmp.ne.s32.totalorder %s248, %s262
      %p264 = scmp.eq.s32.totalorder %s28, 0
      %p265 = por %p263, %p264
      %s267 = sadd.s32 %s266, 1
      %p270 = scmp.eq.s32.totalorder %s22, 1
      %p271 = scmp.ne.s32.totalorder %s266, %s268
      %p272 = scmp.eq.s32.totalorder %s22, 0
      %p273 = por %p271, %p272
      %p274 = scmp.ne.s32.totalorder %s266, %s268
      %p275 = scmp.eq.s32.totalorder %s27, 1
      %p276 = por %p274, %p275
      %p277 = scmp.ne.s32.totalorder %s268, %s269
      %p278 = scmp.eq.s32.totalorder %s27, 0
      %p279 = por %p277, %p278
      %p280 = scmp.ne.s32.totalorder %s268, %s269
      %p281 = scmp.eq.s32.totalorder %s28, 1
      %p282 = por %p280, %p281
      %p284 = scmp.ne.s32.totalorder %s269, %s283
      %p285 = scmp.eq.s32.totalorder %s28, 0
      %p286 = por %p284, %p285
      %s288 = sadd.s32 %s287, 1
      %p291 = scmp.eq.s32.totalorder %s22, 1
      %p292 = scmp.ne.s32.totalorder %s287, %s289
      %p293 = scmp.eq.s32.totalorder %s22, 0
      %p294 = por %p292, %p293
      %p295 = scmp.ne.s32.totalorder %s287, %s289
      %p296 = scmp.eq.s32.totalorder %s27, 1
      %p297 = por %p295, %p296
      %p298 = scmp.ne.s32.totalorder %s289, %s290
      %p299 = scmp.eq.s32.totalorder %s27, 0
      %p300 = por %p298, %p299
      %p301 = scmp.ne.s32.totalorder %s289, %s290
      %p302 = scmp.eq.s32.totalorder %s28, 1
      %p303 = por %p301, %p302
      %p305 = scmp.ne.s32.totalorder %s290, %s304
      %p306 = scmp.eq.s32.totalorder %s28, 0
      %p307 = por %p305, %p306
      %s308 = ssub.s32 %s22, %s29
      %p309 = scmp.eq.s32.totalorder %s308, 0
      %s311 = sadd.s32 %s310, 1
      %s312 = scalar_select %p309, %s310, %s311
      %p315 = pneg %p309
      %p316 = scmp.eq.s32.totalorder %s22, 1
      %p317 = por %p315, %p316
      %p318 = scmp.ne.s32.totalorder %s310, %s313
      %p319 = scmp.eq.s32.totalorder %s22, 0
      %p320 = por %p318, %p319
      %p321 = scmp.ne.s32.totalorder %s310, %s313
      %p322 = scmp.eq.s32.totalorder %s27, 1
      %p323 = por %p321, %p322
      %p324 = scmp.ne.s32.totalorder %s313, %s314
      %p325 = scmp.eq.s32.totalorder %s27, 0
      %p326 = por %p324, %p325
      %p327 = scmp.ne.s32.totalorder %s313, %s314
      %p328 = scmp.eq.s32.totalorder %s28, 1
      %p329 = por %p327, %p328
      %p331 = scmp.ne.s32.totalorder %s314, %s330
      %p332 = scmp.eq.s32.totalorder %s28, 0
      %p333 = por %p331, %p332
      %p334 = scmp.le.s32.totalorder 1, %s22
      %p335 = scmp.lt.s32.totalorder %s22, 3
      %p336 = pnand %p334, %p335
      %p337 = pneg %p336
      // Predicated region
      $region9: #{tpu_custom_call.1} parent=5 // pred_check
        _
      $region10: #{tpu_custom_call.1} parent=5 // pred_check_branch
        %339 = sbr.rel (%p336) target = $region12
      $region11: #{tpu_custom_call.1} parent=5 // pred_region
        %s340 = ssub.s32 %s22, 1
        // Predicated region
        $region13: #{tpu_custom_call.1} parent=11 // pred_check
          %p341 = pneg %p69
        $region14: #{tpu_custom_call.1} parent=11 // pred_check_branch
          %343 = sbr.rel (%p341) target = $region16
        $region15: #{tpu_custom_call.1} parent=11 // pred_region
          _
        $region16: #{tpu_custom_call.1} parent=11 // pred_fallthru
          _
        // Predicated region
        $region17: #{tpu_custom_call.1} parent=11 // pred_check
          %p344 = pneg %p90
        $region18: #{tpu_custom_call.1} parent=11 // pred_check_branch
          %346 = sbr.rel (%p344) target = $region20
        $region19: #{tpu_custom_call.1} parent=11 // pred_region
          _
        $region20: #{tpu_custom_call.1} parent=11 // pred_fallthru
          _
        // Predicated region
        $region21: #{tpu_custom_call.1} parent=11 // pred_check
          %p347 = pneg %p111
        $region22: #{tpu_custom_call.1} parent=11 // pred_check_branch
          %349 = sbr.rel (%p347) target = $region24
        $region23: #{tpu_custom_call.1} parent=11 // pred_region
          _
        $region24: #{tpu_custom_call.1} parent=11 // pred_fallthru
          _
        // Predicated region
        $region25: #{tpu_custom_call.1} parent=11 // pred_check
          %p350 = pneg %p132
        $region26: #{tpu_custom_call.1} parent=11 // pred_check_branch
          %352 = sbr.rel (%p350) target = $region28
        $region27: #{tpu_custom_call.1} parent=11 // pred_region
          _
        $region28: #{tpu_custom_call.1} parent=11 // pred_fallthru
          _
        // Predicated region
        $region29: #{tpu_custom_call.1} parent=11 // pred_check
          %p353 = pneg %p153
        $region30: #{tpu_custom_call.1} parent=11 // pred_check_branch
          %355 = sbr.rel (%p353) target = $region32
        $region31: #{tpu_custom_call.1} parent=11 // pred_region
          _
        $region32: #{tpu_custom_call.1} parent=11 // pred_fallthru
          _
        // Predicated region
        $region33: #{tpu_custom_call.1} parent=11 // pred_check
          %p356 = pneg %p174
        $region34: #{tpu_custom_call.1} parent=11 // pred_check_branch
          %358 = sbr.rel (%p356) target = $region36
        $region35: #{tpu_custom_call.1} parent=11 // pred_region
          _
        $region36: #{tpu_custom_call.1} parent=11 // pred_fallthru
          _
        // Predicated region
        $region37: #{tpu_custom_call.1} parent=11 // pred_check
          %p359 = pneg %p195
        $region38: #{tpu_custom_call.1} parent=11 // pred_check_branch
          %361 = sbr.rel (%p359) target = $region40
        $region39: #{tpu_custom_call.1} parent=11 // pred_region
          _
        $region40: #{tpu_custom_call.1} parent=11 // pred_fallthru
          _
        // Predicated region
        $region41: #{tpu_custom_call.1} parent=11 // pred_check
          %p362 = pneg %p216
        $region42: #{tpu_custom_call.1} parent=11 // pred_check_branch
          %364 = sbr.rel (%p362) target = $region44
        $region43: #{tpu_custom_call.1} parent=11 // pred_region
          _
        $region44: #{tpu_custom_call.1} parent=11 // pred_fallthru
          _
        // Predicated region
        $region45: #{tpu_custom_call.1} parent=11 // pred_check
          %p365 = pneg %p237
        $region46: #{tpu_custom_call.1} parent=11 // pred_check_branch
          %367 = sbr.rel (%p365) target = $region48
        $region47: #{tpu_custom_call.1} parent=11 // pred_region
          _
        $region48: #{tpu_custom_call.1} parent=11 // pred_fallthru
          _
        // Predicated region
        $region49: #{tpu_custom_call.1} parent=11 // pred_check
          %p368 = pneg %p258
        $region50: #{tpu_custom_call.1} parent=11 // pred_check_branch
          %370 = sbr.rel (%p368) target = $region52
        $region51: #{tpu_custom_call.1} parent=11 // pred_region
          _
        $region52: #{tpu_custom_call.1} parent=11 // pred_fallthru
          _
        // Predicated region
        $region53: #{tpu_custom_call.1} parent=11 // pred_check
          %p371 = pneg %p279
        $region54: #{tpu_custom_call.1} parent=11 // pred_check_branch
          %373 = sbr.rel (%p371) target = $region56
        $region55: #{tpu_custom_call.1} parent=11 // pred_region
          _
        $region56: #{tpu_custom_call.1} parent=11 // pred_fallthru
          _
        // Predicated region
        $region57: #{tpu_custom_call.1} parent=11 // pred_check
          %p374 = pneg %p300
        $region58: #{tpu_custom_call.1} parent=11 // pred_check_branch
          %376 = sbr.rel (%p374) target = $region60
        $region59: #{tpu_custom_call.1} parent=11 // pred_region
          _
        $region60: #{tpu_custom_call.1} parent=11 // pred_fallthru
          _
      $region12: #{tpu_custom_call.1} parent=5 // pred_fallthru
        _
      %p377 = scmp.lt.s32.totalorder %s22, 2
      // Predicated region
      $region61: #{tpu_custom_call.1} parent=5 // pred_check
        %p378 = pneg %p377
      $region62: #{tpu_custom_call.1} parent=5 // pred_check_branch
        %380 = sbr.rel (%p378) target = $region64
      $region63: #{tpu_custom_call.1} parent=5 // pred_region
        // Predicated region
        $region65: #{tpu_custom_call.1} parent=63 // pred_check
          %p381 = pneg %p42
        $region66: #{tpu_custom_call.1} parent=63 // pred_check_branch
          %383 = sbr.rel (%p381) target = $region68
        $region67: #{tpu_custom_call.1} parent=63 // pred_region
          %p384 = scmp.lt.s32.totalorder %s22, 1
          %s385 = scalar_select %p384, %s22, 1
          %s386 = smul.addr %s385, 8
          %s387 = scalar_lea.vmem %s0, %s386
        $region68: #{tpu_custom_call.1} parent=63 // pred_fallthru
          _
      $region64: #{tpu_custom_call.1} parent=5 // pred_fallthru
        _
      %p388 = scmp.le.s32.totalorder 1, %s22
      %p389 = scmp.lt.s32.totalorder %s22, 3
      %p390 = pnand %p388, %p389
      %p391 = pneg %p390
      // Predicated region
      $region69: #{tpu_custom_call.1} parent=5 // pred_check
        _
      $region70: #{tpu_custom_call.1} parent=5 // pred_check_branch
        %393 = sbr.rel (%p390) target = $region72
      $region71: #{tpu_custom_call.1} parent=5 // pred_region
        %s394 = ssub.s32 %s22, 1
        %p395 = scmp.lt.s32.totalorder %s27, 1
        %s396 = scalar_select %p395, %s27, 1
        %s397 = smul.addr %s396, 8
        %s398 = scalar_lea.vmem %s0, %s397
        %p399 = pneg %p48
        %p400 = pneg %p45
        %p401 = pneg %p69
        %p402 = pneg %p66
        %p403 = pneg %p90
        %p404 = pneg %p87
        %p405 = pneg %p111
        %p406 = pneg %p108
        %p407 = pneg %p132
        %p408 = pneg %p129
        %p409 = pneg %p153
        %p410 = pneg %p150
        %p411 = pneg %p174
        %p412 = pneg %p171
        %p413 = pneg %p195
        %p414 = pneg %p192
        %p415 = pneg %p216
        %p416 = pneg %p213
        %p417 = pneg %p237
        %p418 = pneg %p234
        %p419 = pneg %p258
        %p420 = pneg %p255
        %p421 = pneg %p279
        %p422 = pneg %p276
        %p423 = pneg %p300
        %p424 = pneg %p297
        %p425 = pneg %p326
        %p426 = pneg %p323
        %s427 = sand.u32 %s313, 1
        %s428 = scalar_lea.sflag [#allocation3], %s427
        %s429 = sand.u32 %s313, 1
        %s430 = smul.addr %s429, 8
        %s431 = scalar_lea.vmem [#allocation2], %s430
        %p432 = scmp.lt.s32.totalorder %s27, 1
        %s433 = scalar_select %p432, %s27, 1
        %s434 = smul.addr %s433, 8
        %s435 = scalar_lea.vmem %s0, %s434
        %v437 = vld [vmem:[%s435] sm:$0xff]
        %v438 = vld [vmem:[%s1] sm:$0x1]
        %v439 = vld [vmem:[%s2] sm:$0x1]
        %vm440 = vcmask 261120
        %v441 = vsel %vm440, %v437, 0.0
        %442 = vadd.xlane.f32.xlu0 %v441
        %v443 = vpop.xlane.xlu0 %442
        %v444 = vrcp.pop 32.0
        %v445 = vmul.f32 %v443, %v444
        %v446 = vsub.f32 %v437, %v445
        %v447 = vmul.f32 %v446, %v446
        %v448 = vsel %vm440, %v447, 0.0
        %449 = vadd.xlane.f32.xlu0 %v448
        %v450 = vpop.xlane.xlu0 %449
        %v451 = vmul.f32 %v450, %v444
        %v452 = vadd.f32 %v451, 1e-12
        %v453 = vrsqrt.pop %v452
        %v454 = vmul.f32 %v446, %v453
        %v456 = vlaneseq
        %v457 = vshrl.u32 %v456, 7
        %v458 = vsub.s32 0, %v457
        %v459 = vrot.slane %v438, %v458
        %v461 = vmul.f32 %v454, %v459
        %v463 = vlaneseq
        %v464 = vshrl.u32 %v463, 7
        %v465 = vsub.s32 0, %v464
        %v466 = vrot.slane %v439, %v465
        %v468 = vadd.f32 %v461, %v466
        %469 = vxpose.xlu0.b32.start [1/16] %v468, 128
        %470 = vxpose.xlu0.b32.cont [2/16] 0.0, 128
        %471 = vxpose.xlu0.b32.cont [3/16] 0.0, 128
        %472 = vxpose.xlu0.b32.cont [4/16] 0.0, 128
        %473 = vxpose.xlu0.b32.cont [5/16] 0.0, 128
        %474 = vxpose.xlu0.b32.cont [6/16] 0.0, 128
        %475 = vxpose.xlu0.b32.cont [7/16] 0.0, 128
        %476 = vxpose.xlu0.b32.cont [8/16] 0.0, 128
        %477 = vxpose.xlu0.b32.cont [9/16] 0.0, 128
        %478 = vxpose.xlu0.b32.cont [10/16] 0.0, 128
        %479 = vxpose.xlu0.b32.cont [11/16] 0.0, 128
        %480 = vxpose.xlu0.b32.cont [12/16] 0.0, 128
        %481 = vxpose.xlu0.b32.cont [13/16] 0.0, 128
        %482 = vxpose.xlu0.b32.cont [14/16] 0.0, 128
        %483 = vxpose.xlu0.b32.cont [15/16] 0.0, 128
        %484 = vxpose.xlu0.b32.end [16/16] 0.0, 128
        %v485 = vpop.trf.xlu0
        %v486 = vpop.trf.xlu0
        %v487 = vpop.trf.xlu0
        %v488 = vpop.trf.xlu0
        %v489 = vpop.trf.xlu0
        %v490 = vpop.trf.xlu0
        %v491 = vpop.trf.xlu0
        %v492 = vpop.trf.xlu0
        %v493 = vpop.trf.xlu0
        %v494 = vpop.trf.xlu0
        %v495 = vpop.trf.xlu0
        %v496 = vpop.trf.xlu0
        %v497 = vpop.trf.xlu0
        %v498 = vpop.trf.xlu0
        %v499 = vpop.trf.xlu0
        %v500 = vpop.trf.xlu0
        %v501 = vpack.c.bf16 %v486, %v485
        %v502 = vpack.c.bf16 %v488, %v487
        %v503 = vld [vmem:[%s3] sm:$0xf]
        %v504 = vld [vmem:[%s4] sm:$0x1]
        %v506 = vlaneseq
        %v507 = vshrl.u32 %v506, 7
        %v508 = vsub.s32 0, %v507
        %v509 = vrot.slane %v504, %v508
        %vm511 = vcmask 64512
        %v513 = vsel %vm511, %v501, 0
        %v516 = vsel %vm511, %v502, 0
        %vm518 = vcmask 1043456
        %v520 = vsel %vm518, %v503, 0
        %522 = vmatprep.subr.bf16.mxu0 0
        %523 = vmatpush1.bf16.msra.mxu0 %v520
        %524 = vmatprep.subr.bf16.mxu0 0
        %525 = vmatpush1.bf16.msra.mxu0 0
        %526 = vmatprep.subr.bf16.mxu0 0
        %527 = vmatpush1.bf16.msra.mxu0 0
        %528 = vmatprep.subr.bf16.mxu0 0
        %529 = vmatpush1.bf16.msra.mxu0 0
        %530 = vmatprep.subr.bf16.mxu0 0
        %531 = vmatpush1.bf16.msra.mxu0 0
        %532 = vmatprep.subr.bf16.mxu0 0
        %533 = vmatpush1.bf16.msra.mxu0 0
        %534 = vmatprep.subr.bf16.mxu0 0
        %535 = vmatpush1.bf16.msra.mxu0 0
        %536 = vmatprep.subr.bf16.mxu0 0
        %537 = vmatpush1.bf16.msra.mxu0 0
        %538 = vmatprep.subr.bf16.mxu0 0
        %539 = vmatpush1.bf16.msra.mxu0 0
        %540 = vmatprep.subr.bf16.mxu0 0
        %541 = vmatpush1.bf16.msra.mxu0 0
        %542 = vmatprep.subr.bf16.mxu0 0
        %543 = vmatpush1.bf16.msra.mxu0 0
        %544 = vmatprep.subr.bf16.mxu0 0
        %545 = vmatpush1.bf16.msra.mxu0 0
        %546 = vmatprep.subr.bf16.mxu0 0
        %547 = vmatpush1.bf16.msra.mxu0 0
        %548 = vmatprep.subr.bf16.mxu0 0
        %549 = vmatpush1.bf16.msra.mxu0 0
        %550 = vmatprep.subr.bf16.mxu0 0
        %551 = vmatpush1.bf16.msra.mxu0 0
        %552 = vmatprep.subr.bf16.mxu0 0
        %553 = vmatpush1.bf16.msra.mxu0 0
        %554 = vmatprep.mubr.bf16.mxu0 0
        %555 = vmatmul.mubr.bf16.gmra.mrb[0].mxu0 %v513
        %v556 = vpop.f32.mrb[0].mxu0
        %v557 = vadd.f32 %v509, %v556
        %v558 = vpop.f32.mrb[0].mxu0
        %v559 = vpop.f32.mrb[0].mxu0
        %v560 = vadd.f32 %v509, %v559
        %v561 = vpop.f32.mrb[0].mxu0
        %562 = vmatprep.mubr.bf16.mxu0 0
        %563 = vmatmul.mubr.bf16.gmra.mrb[0].mxu0 %v516
        %v564 = vpop.f32.mrb[0].mxu0
        %v565 = vadd.f32 %v509, %v564
        %v566 = vpop.f32.mrb[0].mxu0
        %v567 = vpop.f32.mrb[0].mxu0
        %v568 = vadd.f32 %v509, %v567
        %v569 = vpop.f32.mrb[0].mxu0
        %570 = vdwg.mxu0
        %v571 = vmul.f32 %v557, 0.5
        %v572 = vmul.f32 %v560, 0.5
        %v573 = vmul.f32 %v565, 0.5
        %v574 = vmul.f32 %v568, 0.5
        %v575 = vmul.f32 %v557, 0.70710677
        %v576 = vmul.f32 %v560, 0.70710677
        %v577 = vmul.f32 %v565, 0.70710677
        %v578 = vmul.f32 %v568, 0.70710677
        %v579 = verf.f32.pop %v575
        %v580 = verf.f32.pop %v576
        %v581 = verf.f32.pop %v577
        %v582 = verf.f32.pop %v578
        %v583 = vadd.f32 %v579, 1.0
        %v584 = vadd.f32 %v580, 1.0
        %v585 = vadd.f32 %v581, 1.0
        %v586 = vadd.f32 %v582, 1.0
        %v587 = vmul.f32 %v571, %v583
        %v588 = vmul.f32 %v572, %v584
        %v589 = vmul.f32 %v573, %v585
        %v590 = vmul.f32 %v574, %v586
        %v591 = vpack.c.bf16 %v588, %v587
        %v592 = vpack.c.bf16 %v590, %v589
        %v593 = vld [vmem:[%s5] sm:$0xf]
        %v594 = vld [vmem:[%s5 + $0x4] sm:$0xf]
        %v595 = vld [vmem:[%s6] sm:$0x1]
        %v597 = vlaneseq
        %v598 = vshrl.u32 %v597, 7
        %v599 = vsub.s32 0, %v598
        %v600 = vrot.slane %v595, %v599
        %v604 = vunpack.c.l.b16 %v593
        %v605 = vunpack.c.l.b16 %v594
        %v606 = vpack.c.b16 %v605, %v604
        %vm608 = vcmask 130048
        %v610 = vsel %vm608, %v591, 0
        %v613 = vsel %vm608, %v592, 0
        %615 = vmatprep.subr.bf16.mxu0 0
        %616 = vmatpush1.bf16.msra.mxu0 %v606
        %617 = vmatprep.subr.bf16.mxu0 0
        %618 = vmatpush1.bf16.msra.mxu0 0
        %619 = vmatprep.subr.bf16.mxu0 0
        %620 = vmatpush1.bf16.msra.mxu0 0
        %621 = vmatprep.subr.bf16.mxu0 0
        %622 = vmatpush1.bf16.msra.mxu0 0
        %623 = vmatprep.subr.bf16.mxu0 0
        %624 = vmatpush1.bf16.msra.mxu0 0
        %625 = vmatprep.subr.bf16.mxu0 0
        %626 = vmatpush1.bf16.msra.mxu0 0
        %627 = vmatprep.subr.bf16.mxu0 0
        %628 = vmatpush1.bf16.msra.mxu0 0
        %629 = vmatprep.subr.bf16.mxu0 0
        %630 = vmatpush1.bf16.msra.mxu0 0
        %631 = vmatprep.subr.bf16.mxu0 0
        %632 = vmatpush1.bf16.msra.mxu0 0
        %633 = vmatprep.subr.bf16.mxu0 0
        %634 = vmatpush1.bf16.msra.mxu0 0
        %635 = vmatprep.subr.bf16.mxu0 0
        %636 = vmatpush1.bf16.msra.mxu0 0
        %637 = vmatprep.subr.bf16.mxu0 0
        %638 = vmatpush1.bf16.msra.mxu0 0
        %639 = vmatprep.subr.bf16.mxu0 0
        %640 = vmatpush1.bf16.msra.mxu0 0
        %641 = vmatprep.subr.bf16.mxu0 0
        %642 = vmatpush1.bf16.msra.mxu0 0
        %643 = vmatprep.subr.bf16.mxu0 0
        %644 = vmatpush1.bf16.msra.mxu0 0
        %645 = vmatprep.subr.bf16.mxu0 0
        %646 = vmatpush1.bf16.msra.mxu0 0
        %647 = vmatprep.mubr.bf16.mxu0 0
        %648 = vmatmul.mubr.bf16.gmra.mrb[0].mxu0 %v610
        %v649 = vpop.f32.mrb[0].mxu0
        %v650 = vadd.f32 %v600, %v649
        %v651 = vpop.f32.mrb[0].mxu0
        %v652 = vpop.f32.mrb[0].mxu0
        %v653 = vadd.f32 %v600, %v652
        %v654 = vpop.f32.mrb[0].mxu0
        %655 = vmatprep.mubr.bf16.mxu0 0
        %656 = vmatmul.mubr.bf16.gmra.mrb[0].mxu0 %v613
        %v657 = vpop.f32.mrb[0].mxu0
        %v658 = vadd.f32 %v600, %v657
        %v659 = vpop.f32.mrb[0].mxu0
        %v660 = vpop.f32.mrb[0].mxu0
        %v661 = vadd.f32 %v600, %v660
        %v662 = vpop.f32.mrb[0].mxu0
        %663 = vdwg.mxu0
        %664 = vxpose.xlu0.b32.start [1/16] %v650, 128
        %665 = vxpose.xlu0.b32.cont [2/16] %v653, 128
        %666 = vxpose.xlu0.b32.cont [3/16] %v658, 128
        %667 = vxpose.xlu0.b32.cont [4/16] %v661, 128
        %668 = vxpose.xlu0.b32.cont [5/16] 0.0, 128
        %669 = vxpose.xlu0.b32.cont [6/16] 0.0, 128
        %670 = vxpose.xlu0.b32.cont [7/16] 0.0, 128
        %671 = vxpose.xlu0.b32.cont [8/16] 0.0, 128
        %672 = vxpose.xlu0.b32.cont [9/16] 0.0, 128
        %673 = vxpose.xlu0.b32.cont [10/16] 0.0, 128
        %674 = vxpose.xlu0.b32.cont [11/16] 0.0, 128
        %675 = vxpose.xlu0.b32.cont [12/16] 0.0, 128
        %676 = vxpose.xlu0.b32.cont [13/16] 0.0, 128
        %677 = vxpose.xlu0.b32.cont [14/16] 0.0, 128
        %678 = vxpose.xlu0.b32.cont [15/16] 0.0, 128
        %679 = vxpose.xlu0.b32.end [16/16] 0.0, 128
        %v680 = vpop.trf.xlu0
        %v681 = vpop.trf.xlu0
        %v682 = vpop.trf.xlu0
        %v683 = vpop.trf.xlu0
        %v684 = vpop.trf.xlu0
        %v685 = vpop.trf.xlu0
        %v686 = vpop.trf.xlu0
        %v687 = vpop.trf.xlu0
        %v688 = vpop.trf.xlu0
        %v689 = vpop.trf.xlu0
        %v690 = vpop.trf.xlu0
        %v691 = vpop.trf.xlu0
        %v692 = vpop.trf.xlu0
        %v693 = vpop.trf.xlu0
        %v694 = vpop.trf.xlu0
        %v695 = vpop.trf.xlu0
        %v696 = vadd.f32 %v680, %v437
        %v697 = vld [vmem:[%s7] sm:$0x1]
        %v698 = vld [vmem:[%s8] sm:$0x1]
        %v699 = vsel %vm440, %v696, 0.0
        %700 = vadd.xlane.f32.xlu0 %v699
        %v701 = vpop.xlane.xlu0 %700
        %v702 = vmul.f32 %v701, %v444
        %v703 = vsub.f32 %v696, %v702
        %v704 = vmul.f32 %v703, %v703
        %v705 = vsel %vm440, %v704, 0.0
        %706 = vadd.xlane.f32.xlu0 %v705
        %v707 = vpop.xlane.xlu0 %706
        %v708 = vmul.f32 %v707, %v444
        %v709 = vadd.f32 %v708, 1e-12
        %v710 = vrsqrt.pop %v709
        %v711 = vmul.f32 %v703, %v710
        %v713 = vlaneseq
        %v714 = vshrl.u32 %v713, 7
        %v715 = vsub.s32 0, %v714
        %v716 = vrot.slane %v697, %v715
        %v718 = vmul.f32 %v711, %v716
        %v720 = vlaneseq
        %v721 = vshrl.u32 %v720, 7
        %v722 = vsub.s32 0, %v721
        %v723 = vrot.slane %v698, %v722
        %v725 = vadd.f32 %v718, %v723
        %v726 = vpack.c.bf16 %v725, %v725
        %v727 = vld [vmem:[%s9] sm:$0xf]
        %v728 = vld [vmem:[%s9 + $0x4] sm:$0xf]
        %v729 = vld [vmem:[%s9 + $0x8] sm:$0xf]
        %v730 = vld [vmem:[%s9 + $0xc] sm:$0xf]
        %v731 = vld [vmem:[%s10] sm:$0x1]
        %v733 = vlaneseq
        %v734 = vshrl.u32 %v733, 7
        %v735 = vsub.s32 0, %v734
        %v736 = vrot.slane %v731, %v735
        %v742 = vunpack.c.l.b16 %v727
        %v743 = vunpack.c.l.b16 %v728
        %v744 = vunpack.c.l.b16 %v729
        %v745 = vunpack.c.l.b16 %v730
        %v746 = vpack.c.b16 %v743, %v742
        %v747 = vpack.c.b16 %v745, %v744
        %v751 = vsel %vm440, %v726, 0
        %753 = vmatprep.subr.bf16.mxu0 0
        %754 = vmatpush1.bf16.msra.mxu0 %v746
        %755 = vmatprep.subr.bf16.mxu0 0
        %756 = vmatpush1.bf16.msra.mxu0 %v747
        %757 = vmatprep.subr.bf16.mxu0 0
        %758 = vmatpush1.bf16.msra.mxu0 0
        %759 = vmatprep.subr.bf16.mxu0 0
        %760 = vmatpush1.bf16.msra.mxu0 0
        %761 = vmatprep.subr.bf16.mxu0 0
        %762 = vmatpush1.bf16.msra.mxu0 0
        %763 = vmatprep.subr.bf16.mxu0 0
        %764 = vmatpush1.bf16.msra.mxu0 0
        %765 = vmatprep.subr.bf16.mxu0 0
        %766 = vmatpush1.bf16.msra.mxu0 0
        %767 = vmatprep.subr.bf16.mxu0 0
        %768 = vmatpush1.bf16.msra.mxu0 0
        %769 = vmatprep.subr.bf16.mxu0 0
        %770 = vmatpush1.bf16.msra.mxu0 0
        %771 = vmatprep.subr.bf16.mxu0 0
        %772 = vmatpush1.bf16.msra.mxu0 0
        %773 = vmatprep.subr.bf16.mxu0 0
        %774 = vmatpush1.bf16.msra.mxu0 0
        %775 = vmatprep.subr.bf16.mxu0 0
        %776 = vmatpush1.bf16.msra.mxu0 0
        %777 = vmatprep.subr.bf16.mxu0 0
        %778 = vmatpush1.bf16.msra.mxu0 0
        %779 = vmatprep.subr.bf16.mxu0 0
        %780 = vmatpush1.bf16.msra.mxu0 0
        %781 = vmatprep.subr.bf16.mxu0 0
        %782 = vmatpush1.bf16.msra.mxu0 0
        %783 = vmatprep.subr.bf16.mxu0 0
        %784 = vmatpush1.bf16.msra.mxu0 0
        %785 = vmatprep.mubr.bf16.mxu0 0
        %786 = vmatmul.mubr.bf16.gmra.mrb[0].mxu0 %v751
        %v787 = vpop.f32.mrb[0].mxu0
        %v788 = vadd.f32 %v736, %v787
        %v789 = vpop.f32.mrb[0].mxu0
        %v790 = vpop.f32.mrb[0].mxu0
        %v791 = vpop.f32.mrb[0].mxu0
        %792 = vdwg.mxu0
        %v793 = vmul.f32 %v788, 0.5
        %v794 = vmul.f32 %v788, 0.70710677
        %v795 = verf.f32.pop %v794
        %v796 = vadd.f32 %v795, 1.0
        %v797 = vmul.f32 %v793, %v796
        %v798 = vpack.c.bf16 %v797, %v797
        %v799 = vld [vmem:[%s11] sm:$0xf]
        %v800 = vld [vmem:[%s11 + $0x4] sm:$0xf]
        %v801 = vld [vmem:[%s11 + $0x8] sm:$0xf]
        %v802 = vld [vmem:[%s11 + $0xc] sm:$0xf]
        %v803 = vld [vmem:[%s11 + $0x10] sm:$0xf]
        %v804 = vld [vmem:[%s11 + $0x14] sm:$0xf]
        %v805 = vld [vmem:[%s11 + $0x18] sm:$0xf]
        %v806 = vld [vmem:[%s11 + $0x1c] sm:$0xf]
        %v807 = vld [vmem:[%s12] sm:$0x1]
        %v809 = vlaneseq
        %v810 = vshrl.u32 %v809, 7
        %v811 = vsub.s32 0, %v810
        %v812 = vrot.slane %v807, %v811
        %v822 = vunpack.c.l.b16 %v799
        %v823 = vunpack.c.l.b16 %v800
        %v824 = vunpack.c.l.b16 %v801
        %v825 = vunpack.c.l.b16 %v802
        %v826 = vunpack.c.l.b16 %v803
        %v827 = vunpack.c.l.b16 %v804
        %v828 = vunpack.c.l.b16 %v805
        %v829 = vunpack.c.l.b16 %v806
        %v830 = vpack.c.b16 %v823, %v822
        %v831 = vpack.c.b16 %v825, %v824
        %v832 = vpack.c.b16 %v827, %v826
        %v833 = vpack.c.b16 %v829, %v828
        %vm838 = vcmask 523264
        %v840 = vsel %vm838, %v798, 0
        %842 = vmatprep.subr.bf16.mxu0 0
        %843 = vmatpush1.bf16.msra.mxu0 %v830
        %844 = vmatprep.subr.bf16.mxu0 0
        %845 = vmatpush1.bf16.msra.mxu0 %v831
        %846 = vmatprep.subr.bf16.mxu0 0
        %847 = vmatpush1.bf16.msra.mxu0 %v832
        %848 = vmatprep.subr.bf16.mxu0 0
        %849 = vmatpush1.bf16.msra.mxu0 %v833
        %850 = vmatprep.subr.bf16.mxu0 0
        %851 = vmatpush1.bf16.msra.mxu0 0
        %852 = vmatprep.subr.bf16.mxu0 0
        %853 = vmatpush1.bf16.msra.mxu0 0
        %854 = vmatprep.subr.bf16.mxu0 0
        %855 = vmatpush1.bf16.msra.mxu0 0
        %856 = vmatprep.subr.bf16.mxu0 0
        %857 = vmatpush1.bf16.msra.mxu0 0
        %858 = vmatprep.subr.bf16.mxu0 0
        %859 = vmatpush1.bf16.msra.mxu0 0
        %860 = vmatprep.subr.bf16.mxu0 0
        %861 = vmatpush1.bf16.msra.mxu0 0
        %862 = vmatprep.subr.bf16.mxu0 0
        %863 = vmatpush1.bf16.msra.mxu0 0
        %864 = vmatprep.subr.bf16.mxu0 0
        %865 = vmatpush1.bf16.msra.mxu0 0
        %866 = vmatprep.subr.bf16.mxu0 0
        %867 = vmatpush1.bf16.msra.mxu0 0
        %868 = vmatprep.subr.bf16.mxu0 0
        %869 = vmatpush1.bf16.msra.mxu0 0
        %870 = vmatprep.subr.bf16.mxu0 0
        %871 = vmatpush1.bf16.msra.mxu0 0
        %872 = vmatprep.subr.bf16.mxu0 0
        %873 = vmatpush1.bf16.msra.mxu0 0
        %874 = vmatprep.mubr.bf16.mxu0 0
        %875 = vmatmul.mubr.bf16.gmra.mrb[0].mxu0 %v840
        %v876 = vpop.f32.mrb[0].mxu0
        %v877 = vadd.f32 %v812, %v876
        %v878 = vpop.f32.mrb[0].mxu0
        %v879 = vpop.f32.mrb[0].mxu0
        %v880 = vpop.f32.mrb[0].mxu0
        %881 = vdwg.mxu0
        %v882 = vadd.f32 %v877, %v696
        %883 = vst.msk [vmem:[%s431] sm:$0xff] %vm440, %v882
        %s884 = sand.u32 %s313, 1
        %s885 = scalar_lea.sflag [#allocation3], %s884
        %s886 = sand.u32 %s313, 1
        %s887 = smul.addr %s886, 8
        %s888 = scalar_lea.vmem [#allocation2], %s887
        // Predicated region
        $region73: #{tpu_custom_call.1} parent=71 // pred_check
          %p889 = pneg %p323
        $region74: #{tpu_custom_call.1} parent=71 // pred_check_branch
          %891 = sbr.rel (%p889) target = $region76
        $region75: #{tpu_custom_call.1} parent=71 // pred_region
          %s893 = ssub.s32 128, 128
          %894 = vsyncadd %s885, %s893
          %s895 = smul.addr %s27, 128
          %s896 = scalar_lea.hbm %s13, %s895
          %s898 = sshll.u32 %s888, 4
          %s899 = int_to_ptr.vmem [resolvable:$true] %s898
          %901 = dma.vmem_to_hbm [thread:$0]  %s899, 128, %s896, %s885
        $region76: #{tpu_custom_call.1} parent=71 // pred_fallthru
          _
      $region72: #{tpu_custom_call.1} parent=5 // pred_fallthru
        _
      %p902 = scmp.le.s32.totalorder 2, %s22
      // Predicated region
      $region77: #{tpu_custom_call.1} parent=5 // pred_check
        %p903 = pneg %p902
      $region78: #{tpu_custom_call.1} parent=5 // pred_check_branch
        %905 = sbr.rel (%p903) target = $region80
      $region79: #{tpu_custom_call.1} parent=5 // pred_region
        %s906 = ssub.s32 %s22, 2
        // Predicated region
        $region81: #{tpu_custom_call.1} parent=79 // pred_check
          %p907 = pneg %p329
        $region82: #{tpu_custom_call.1} parent=79 // pred_check_branch
          %909 = sbr.rel (%p907) target = $region84
        $region83: #{tpu_custom_call.1} parent=79 // pred_region
          %s910 = sand.u32 %s314, 1
          %s911 = scalar_lea.sflag [#allocation3], %s910
          %s912 = sand.u32 %s314, 1
          %s913 = smul.addr %s912, 8
          %s914 = scalar_lea.vmem [#allocation2], %s913
          %915 = dma.done %s911, 128
        $region84: #{tpu_custom_call.1} parent=79 // pred_fallthru
          _
      $region80: #{tpu_custom_call.1} parent=5 // pred_fallthru
        _
    $region6: #{tpu_custom_call.1} parent=1 // loop_footer
      %s26 = sadd.s32 1, %s22
    $region7: #{tpu_custom_call.1} parent=1 // loop_footer_branch
      %21 = sbr.rel target = $region3
    $region8: #{tpu_custom_call.1} parent=1 // loop_exit
      _
    %916 = vsyncpa [#allocation3], 1
    %s917 = scalar_lea.sflag [#allocation3], 1
    %918 = vsyncpa %s917, 1

</llo_original>
